<compile_context>
chip_gen: v7x
topology: tpu7x:2x2x1
jax: 0.10.0
libtpu: 0.0.40
codegen_flags: <defaults>
</compile_context>

<pallas_src>
import functools
import math

import jax
import jax.numpy as jnp
from jax import lax
from jax.experimental import pallas as pl
from jax.experimental.pallas import tpu as pltpu


# --------------------------------- sizing helpers ---------------------------------

_TARGET_STEPS = 8            # >= 4 steps per TensorCore on v7x keeps the pipeline busy
_MIN_SHRINK_BYTES = 1 << 20  # never split blocks below ~1 MiB just to add grid steps


def _round_up(x, m):
    return (x + m - 1) // m * m


def _vmem_limit_bytes():
    """Generation-aware scoped-VMEM request (per TensorCore)."""
    phys = 64 * 1024 * 1024  # conservative fallback (v7x per-TC VMEM)
    try:
        info = pltpu.get_tpu_info()
        phys = int(getattr(info, "vmem_capacity_bytes", phys))
    except Exception:
        pass
    # Leave ~25% headroom; never request more than 96 MiB even on 128 MiB parts.
    return int(min(phys * 3 // 4, 96 * 1024 * 1024))


def _block_elems_budget(itemsize, vmem_limit, n_f32_temps=4):
    """Max elements per block given: 2 in + 2 out dtype buffers (double buffering)
    plus ~n block-sized f32 intermediates inside the kernel, plus small headroom."""
    per_elem = 4 * itemsize + 4 * n_f32_temps
    headroom = 2 * 1024 * 1024  # weights / segment matrix / compiler scratch
    return max(1, (vmem_limit - headroom) // per_elem)


# --------------------- channels_first: x (N, C, H, W), normalize over C ---------------------

def _ln_cf_kernel(x_ref, w_ref, b_ref, o_ref, *, eps, inv_c):
    # x_ref: (bn, C, bhw) block; normalize over axis 1 (C). Single-pass stats + fused affine.
    x = x_ref[...].astype(jnp.float32)
    ex = jnp.sum(x, axis=1, keepdims=True) * inv_c            # (bn, 1, bhw)
    ex2 = jnp.sum(x * x, axis=1, keepdims=True) * inv_c
    inv = lax.rsqrt(jnp.maximum(ex2 - ex * ex, 0.0) + eps)    # rsqrt -> EUP slot
    w = w_ref[...].astype(jnp.float32)[None, :, :]            # (1, C, 1)
    b = b_ref[...].astype(jnp.float32)[None, :, :]
    scale = w * inv                                           # (bn, C, bhw)
    o_ref[...] = (x * scale + (b - ex * scale)).astype(o_ref.dtype)


def layernorm_channels_first(x, weight, bias, eps=1e-6):
    N, C, H, W = x.shape
    HW = H * W
    x3 = x.reshape(N, C, HW)          # contiguous (free) reshape: lane-dense last axis
    w2 = weight.reshape(C, 1)
    b2 = bias.reshape(C, 1)
    itemsize = x.dtype.itemsize

    vmem_limit = _vmem_limit_bytes()
    elems_budget = _block_elems_budget(itemsize, vmem_limit, n_f32_temps=4)

    # Lane-axis (H*W) tile: multiple of 128, prefer >= 512 lanes, sized so one batch
    # element's (C, block_hw) slab fits the per-block budget.
    hw_padded = _round_up(HW, 128)
    max_hw = max(128, (elems_budget // max(C, 1)) // 128 * 128)
    block_hw = min(hw_padded, max_hw)
    if block_hw < hw_padded and block_hw > 512:
        block_hw = max(512, block_hw // 512 * 512)
    if block_hw >= HW:
        block_hw = HW                 # full dim always satisfies the (8,128) rule

    block_n = int(max(1, min(N, elems_budget // max(C * block_hw, 1))))

    def _steps(bn, bhw):
        return pl.cdiv(N, bn) * pl.cdiv(HW, bhw)

    def _bytes(bn, bhw):
        return bn * C * bhw * itemsize

    # Aim for >= _TARGET_STEPS steps (pipeline overlap / both v7x TCs busy); shrink
    # block_n first, then block_hw (never below 512 lanes), never below ~1 MiB blocks.
    while (block_n > 1 and _steps(block_n, block_hw) < _TARGET_STEPS
           and _bytes(block_n, block_hw) > 2 * _MIN_SHRINK_BYTES):
        block_n = max(1, block_n // 2)
    while (block_hw > 512 and _steps(block_n, block_hw) < _TARGET_STEPS
           and _bytes(block_n, block_hw) > 2 * _MIN_SHRINK_BYTES):
        block_hw = max(512, _round_up(block_hw // 2, 128))

    grid = (pl.cdiv(N, block_n), pl.cdiv(HW, block_hw))
    out = pl.pallas_call(
        functools.partial(_ln_cf_kernel, eps=float(eps), inv_c=1.0 / C),
        out_shape=jax.ShapeDtypeStruct((N, C, HW), x.dtype),
        grid=grid,
        in_specs=[
            pl.BlockSpec((block_n, C, block_hw), lambda i, j: (i, 0, j)),
            pl.BlockSpec((C, 1), lambda i, j: (0, 0)),
            pl.BlockSpec((C, 1), lambda i, j: (0, 0)),
        ],
        out_specs=pl.BlockSpec((block_n, C, block_hw), lambda i, j: (i, 0, j)),
        compiler_params=pltpu.CompilerParams(
            dimension_semantics=("parallel", "parallel"),
            vmem_limit_bytes=vmem_limit,
        ),
    )(x3, w2, b2)
    return out.reshape(N, C, H, W)


# --------------------- channels_last: x (..., C), normalize over last dim C ---------------------

def _ln_cl_kernel(x_ref, w_ref, b_ref, o_ref, *, eps, inv_c):
    # Generic path (C >= 128 or 128 % C != 0): per-row reduce over the lane axis.
    x = x_ref[...].astype(jnp.float32)                        # (Rb, C)
    ex = jnp.sum(x, axis=-1, keepdims=True) * inv_c
    ex2 = jnp.sum(x * x, axis=-1, keepdims=True) * inv_c
    inv = lax.rsqrt(jnp.maximum(ex2 - ex * ex, 0.0) + eps)
    w = w_ref[...].astype(jnp.float32)                        # (1, C)
    b = b_ref[...].astype(jnp.float32)
    scale = w * inv
    o_ref[...] = (x * scale + (b - ex * scale)).astype(o_ref.dtype)


def _ln_cl_folded_kernel(x_ref, w_ref, b_ref, o_ref, *, eps, c):
    # Small-C path: each lane row packs k = lanes // c original rows back-to-back, so
    # loads/stores are full 128-lane unmasked accesses. Per-segment (length c) sums are
    # computed with a block-diagonal ones matmul on the otherwise-idle MXU.
    x = x_ref[...].astype(jnp.float32)                        # (Rb, k*C)
    lanes = x.shape[-1]
    i_idx = lax.broadcasted_iota(jnp.int32, (lanes, lanes), 0)
    j_idx = lax.broadcasted_iota(jnp.int32, (lanes, lanes), 1)
    seg = (i_idx // c == j_idx // c).astype(jnp.float32)      # c is a power of two -> shift
    inv_c = 1.0 / c
    ex = jnp.dot(x, seg, preferred_element_type=jnp.float32) * inv_c       # (Rb, lanes)
    ex2 = jnp.dot(x * x, seg, preferred_element_type=jnp.float32) * inv_c
    inv = lax.rsqrt(jnp.maximum(ex2 - ex * ex, 0.0) + eps)
    w = w_ref[...].astype(jnp.float32)                        # (1, lanes) = k-tiled weight
    b = b_ref[...].astype(jnp.float32)
    scale = w * inv
    o_ref[...] = (x * scale + (b - ex * scale)).astype(o_ref.dtype)


def layernorm_channels_last(x, weight, bias, eps=1e-6):
    *lead, C = x.shape
    R = int(math.prod(lead)) if lead else 1
    xf = x.reshape(R, C)
    itemsize = x.dtype.itemsize
    vmem_limit = _vmem_limit_bytes()

    fold = (C < 128) and (128 % C == 0)
    if fold:
        k = 128 // C
        R_pad = _round_up(R, k)
        if R_pad != R:
            xf = jnp.pad(xf, ((0, R_pad - R), (0, 0)))        # dummy rows, dropped after
        rows = R_pad // k
        lanes = k * C
        x2 = xf.reshape(rows, lanes)                           # free contiguous reshape
        w2 = jnp.tile(weight.reshape(-1), k).reshape(1, lanes)
        b2 = jnp.tile(bias.reshape(-1), k).reshape(1, lanes)
        kernel = functools.partial(_ln_cl_folded_kernel, eps=float(eps), c=int(C))
        n_temps = 6
    else:
        rows, lanes = R, C
        x2 = xf
        w2 = weight.reshape(1, C)
        b2 = bias.reshape(1, C)
        kernel = functools.partial(_ln_cl_kernel, eps=float(eps), inv_c=1.0 / C)
        n_temps = 4

    elems_budget = _block_elems_budget(itemsize, vmem_limit, n_f32_temps=n_temps)
    block_rows = max(8, (elems_budget // max(lanes, 1)) // 8 * 8)
    if block_rows >= rows:
        block_rows = rows             # full dim always satisfies the (8,128) rule
    while (block_rows > 8 and pl.cdiv(rows, block_rows) < _TARGET_STEPS
           and block_rows * lanes * itemsize > 2 * _MIN_SHRINK_BYTES):
        block_rows = max(8, _round_up(block_rows // 2, 8))

    grid = (pl.cdiv(rows, block_rows),)
    out = pl.pallas_call(
        kernel,
        out_shape=jax.ShapeDtypeStruct((rows, lanes), x.dtype),
        grid=grid,
        in_specs=[
            pl.BlockSpec((block_rows, lanes), lambda i: (i, 0)),
            pl.BlockSpec((1, lanes), lambda i: (0, 0)),
            pl.BlockSpec((1, lanes), lambda i: (0, 0)),
        ],
        out_specs=pl.BlockSpec((block_rows, lanes), lambda i: (i, 0)),
        compiler_params=pltpu.CompilerParams(
            dimension_semantics=("parallel",),
            vmem_limit_bytes=vmem_limit,
        ),
    )(x2, w2, b2)

    out = out.reshape(-1, C)[:R]      # unfold + drop padded rows (no-op when not folded)
    return out.reshape(*lead, C) if lead else out.reshape(C)


# --------------------------------- pure-jnp references ---------------------------------

def layernorm_channels_first_ref(x, weight, bias, eps=1e-6):
    u = jnp.mean(x, axis=1, keepdims=True)
    s = jnp.mean((x - u) ** 2, axis=1, keepdims=True)
    xn = (x - u) / jnp.sqrt(s + eps)
    return weight[None, :, None, None] * xn + bias[None, :, None, None]


def layernorm_channels_last_ref(x, weight, bias, eps=1e-6):
    u = jnp.mean(x, axis=-1, keepdims=True)
    s = jnp.mean((x - u) ** 2, axis=-1, keepdims=True)
    xn = (x - u) / jnp.sqrt(s + eps)
    return xn * weight + bias


# --------------------------------------- demo ---------------------------------------

if __name__ == "__main__":
    key = jax.random.PRNGKey(0)
    keys = jax.random.split(key, 12)
    eps = 1e-6

    # --- channels_first: (N, C, H, W) = (2, 4, 16, 16), normalized over C ---
    N, C, H, W = 2, 4, 16, 16
    x_cf = jax.random.normal(keys[0], (N, C, H, W), dtype=jnp.float32)
    w_cf = 1.0 + 0.1 * jax.random.normal(keys[1], (C,), dtype=jnp.float32)
    b_cf = 0.1 * jax.random.normal(keys[2], (C,), dtype=jnp.float32)
    out_cf = jax.block_until_ready(layernorm_channels_first(x_cf, w_cf, b_cf, eps))
    ref_cf = layernorm_channels_first_ref(x_cf, w_cf, b_cf, eps)
    assert out_cf.shape == (N, C, H, W), out_cf.shape
    assert jnp.allclose(out_cf, ref_cf, atol=1e-4, rtol=1e-4), "channels_first mismatch"

    # --- channels_first with non-128-multiple spatial size (partial lane block) ---
    x_cf2 = jax.random.normal(keys[3], (2, 4, 7, 7), dtype=jnp.float32)
    out_cf2 = jax.block_until_ready(layernorm_channels_first(x_cf2, w_cf, b_cf, eps))
    ref_cf2 = layernorm_channels_first_ref(x_cf2, w_cf, b_cf, eps)
    assert jnp.allclose(out_cf2, ref_cf2, atol=1e-4, rtol=1e-4), "channels_first odd-HW mismatch"

    # --- channels_last, small C (folded lane-dense path): (2, 16, 16, 32) ---
    Cl = 32
    x_cl = jax.random.normal(keys[4], (2, 16, 16, Cl), dtype=jnp.float32)
    w_cl = 1.0 + 0.1 * jax.random.normal(keys[5], (Cl,), dtype=jnp.float32)
    b_cl = 0.1 * jax.random.normal(keys[6], (Cl,), dtype=jnp.float32)
    out_cl = jax.block_until_ready(layernorm_channels_last(x_cl, w_cl, b_cl, eps))
    ref_cl = layernorm_channels_last_ref(x_cl, w_cl, b_cl, eps)
    assert out_cl.shape == x_cl.shape, out_cl.shape
    assert jnp.allclose(out_cl, ref_cl, atol=1e-4, rtol=1e-4), "channels_last (folded) mismatch"

    # --- channels_last, generic path, rows not a multiple of 8: (3, 5, 7, 128) ---
    Cg = 128
    x_cl2 = jax.random.normal(keys[7], (3, 5, 7, Cg), dtype=jnp.float32)
    w_cl2 = 1.0 + 0.1 * jax.random.normal(keys[8], (Cg,), dtype=jnp.float32)
    b_cl2 = 0.1 * jax.random.normal(keys[9], (Cg,), dtype=jnp.float32)
    out_cl2 = jax.block_until_ready(layernorm_channels_last(x_cl2, w_cl2, b_cl2, eps))
    ref_cl2 = layernorm_channels_last_ref(x_cl2, w_cl2, b_cl2, eps)
    assert out_cl2.shape == x_cl2.shape, out_cl2.shape
    assert jnp.allclose(out_cl2, ref_cl2, atol=1e-4, rtol=1e-4), "channels_last (generic) mismatch"

    print("KERNEL_OK")
</pallas_src>

<mosaic_0001>
module attributes {stable_mosaic.version = 11 : i64} {
  func.func @_ln_cf_kernel(%arg0: i32, %arg1: i32, %arg2: memref<2x4x256xf32, #tpu.memory_space<vmem>>, %arg3: memref<4x1xf32, #tpu.memory_space<vmem>>, %arg4: memref<4x1xf32, #tpu.memory_space<vmem>>, %arg5: memref<2x4x256xf32, #tpu.memory_space<vmem>>) attributes {dimension_semantics = [#tpu.dimension_semantics<parallel>, #tpu.dimension_semantics<parallel>], iteration_bounds = array<i64: 1, 1>, scalar_prefetch = 0 : i64, scratch_operands = 0 : i64, tpu.core_type = #tpu.core_type<tc>, window_params = [{transform_indices = @transform_0, window_bounds = array<i64: 2, 4, 256>}, {pipeline_mode = #tpu.pipeline_mode<synchronous>, transform_indices = @transform_1, window_bounds = array<i64: 4, 1>}, {pipeline_mode = #tpu.pipeline_mode<synchronous>, transform_indices = @transform_2, window_bounds = array<i64: 4, 1>}, {transform_indices = @transform_3, window_bounds = array<i64: 2, 4, 256>}]} {
    %c0 = arith.constant 0 : index
    %c0_0 = arith.constant 0 : index
    %c0_1 = arith.constant 0 : index
    %0 = vector.load %arg2[%c0, %c0_0, %c0_1] : memref<2x4x256xf32, #tpu.memory_space<vmem>>, vector<2x4x256xf32>
    %cst = arith.constant dense<0.000000e+00> : vector<2x256xf32>
    %1 = vector.multi_reduction <add>, %0, %cst [1] : vector<2x4x256xf32> to vector<2x256xf32>
    %2 = vector.shape_cast %1 : vector<2x256xf32> to vector<2x1x256xf32>
    %cst_2 = arith.constant 2.500000e-01 : f32
    %3 = vector.broadcast %cst_2 : f32 to vector<2x1x256xf32>
    %4 = arith.mulf %2, %3 : vector<2x1x256xf32>
    %5 = arith.mulf %0, %0 : vector<2x4x256xf32>
    %cst_3 = arith.constant dense<0.000000e+00> : vector<2x256xf32>
    %6 = vector.multi_reduction <add>, %5, %cst_3 [1] : vector<2x4x256xf32> to vector<2x256xf32>
    %7 = vector.shape_cast %6 : vector<2x256xf32> to vector<2x1x256xf32>
    %cst_4 = arith.constant 2.500000e-01 : f32
    %8 = vector.broadcast %cst_4 : f32 to vector<2x1x256xf32>
    %9 = arith.mulf %7, %8 : vector<2x1x256xf32>
    %10 = arith.mulf %4, %4 : vector<2x1x256xf32>
    %11 = arith.subf %9, %10 : vector<2x1x256xf32>
    %cst_5 = arith.constant 0.000000e+00 : f32
    %12 = vector.broadcast %cst_5 : f32 to vector<2x1x256xf32>
    %13 = arith.maximumf %11, %12 : vector<2x1x256xf32>
    %cst_6 = arith.constant 9.99999997E-7 : f32
    %14 = vector.broadcast %cst_6 : f32 to vector<2x1x256xf32>
    %15 = arith.addf %13, %14 : vector<2x1x256xf32>
    %16 = math.rsqrt %15 : vector<2x1x256xf32>
    %c0_7 = arith.constant 0 : index
    %c0_8 = arith.constant 0 : index
    %17 = vector.load %arg3[%c0_7, %c0_8] : memref<4x1xf32, #tpu.memory_space<vmem>>, vector<4x1xf32>
    %18 = vector.shape_cast %17 : vector<4x1xf32> to vector<1x4x1xf32>
    %c0_9 = arith.constant 0 : index
    %c0_10 = arith.constant 0 : index
    %19 = vector.load %arg4[%c0_9, %c0_10] : memref<4x1xf32, #tpu.memory_space<vmem>>, vector<4x1xf32>
    %20 = vector.shape_cast %19 : vector<4x1xf32> to vector<1x4x1xf32>
    %21 = vector.broadcast %18 : vector<1x4x1xf32> to vector<2x4x256xf32>
    %22 = vector.broadcast %16 : vector<2x1x256xf32> to vector<2x4x256xf32>
    %23 = arith.mulf %21, %22 : vector<2x4x256xf32>
    %24 = arith.mulf %0, %23 : vector<2x4x256xf32>
    %25 = vector.broadcast %4 : vector<2x1x256xf32> to vector<2x4x256xf32>
    %26 = arith.mulf %25, %23 : vector<2x4x256xf32>
    %27 = vector.broadcast %20 : vector<1x4x1xf32> to vector<2x4x256xf32>
    %28 = arith.subf %27, %26 : vector<2x4x256xf32>
    %29 = arith.addf %24, %28 : vector<2x4x256xf32>
    %c0_11 = arith.constant 0 : index
    %c0_12 = arith.constant 0 : index
    %c0_13 = arith.constant 0 : index
    %30 = vector.load %arg5[%c0_11, %c0_12, %c0_13] : memref<2x4x256xf32, #tpu.memory_space<vmem>>, vector<2x4x256xf32>
    tpu.vector_store %arg5[%c0_11, %c0_12, %c0_13], %29 {strides = array<i32>} : memref<2x4x256xf32, #tpu.memory_space<vmem>>, vector<2x4x256xf32>,
    return
  }
  func.func @transform_0(%arg0: i32, %arg1: i32) -> (i32, i32, i32) {
    %c0_i32 = arith.constant 0 : i32
    %c0_i32_0 = arith.constant 0 : i32
    return %arg0, %c0_i32, %arg1 : i32, i32, i32
  }
  func.func @transform_1(%arg0: i32, %arg1: i32) -> (i32, i32) {
    %c0_i32 = arith.constant 0 : i32
    %c0_i32_0 = arith.constant 0 : i32
    %c0_i32_1 = arith.constant 0 : i32
    return %c0_i32, %c0_i32_0 : i32, i32
  }
  func.func @transform_2(%arg0: i32, %arg1: i32) -> (i32, i32) {
    %c0_i32 = arith.constant 0 : i32
    %c0_i32_0 = arith.constant 0 : i32
    %c0_i32_1 = arith.constant 0 : i32
    return %c0_i32, %c0_i32_0 : i32, i32
  }
  func.func @transform_3(%arg0: i32, %arg1: i32) -> (i32, i32, i32) {
    %c0_i32 = arith.constant 0 : i32
    %c0_i32_0 = arith.constant 0 : i32
    return %arg0, %c0_i32, %arg1 : i32, i32, i32
  }
}

</mosaic_0001>

<llo_original>
// kernel: tpu_custom_call.1
$region0: #{tpu_custom_call.1}
  #allocation0 [shape = 'u32[]', space=smem, size = 0x4, offset = 0x4, fixed_abs, tag = 'smem constant byte address 0x4 - core index']
  #allocation1 [shape = 'u32[144,128]{1,0:T(1,128)}', space=vmem, size = 0x12000, scoped, tag = 'internal scratch']
  %s0 = inlined_call_operand.hbm [shape: f32[2,4,256], index: 0, kind: input, shape index: {}]
  %s1 = inlined_call_operand.vmem [shape: f32[4,1], index: 1, kind: input, shape index: {}]
  %s2 = inlined_call_operand.vmem [shape: f32[4,1], index: 2, kind: input, shape index: {}]
  %s3 = inlined_call_operand.hbm [shape: f32[2,4,256], index: 3, kind: output, shape index: {}]
  %s4 = sld [smem:[#allocation0]]
  $region26: #{tpu_custom_call.1} parent=0
    _
  %s6 = ssub.s32 1, %s4
  %s7 = scalar_select 0, %s6, %s4
  $region1: #{tpu_custom_call.1} parent=0
    #allocation2 [shape = 'u8[8192]{0}', space=vmem, size = 0x2000, scoped, tag = 'input window, operand 0, single buffered']
    #allocation3 [shape = 's32[1]{0}', space=sflag, size = 0x4, scoped, tag = 'scoped memory for tpu_custom_call.1']
    #allocation4 [shape = 's32[1]{0}', space=sflag, size = 0x4, scoped, tag = 'scoped memory for tpu_custom_call.1']
    #allocation5 [shape = 'u8[8192]{0}', space=vmem, size = 0x2000, scoped, tag = 'output window, operand 0, single buffered']
    %8 = vsyncpa [#allocation3], 0
    %9 = vsyncpa [#allocation4], 0
    // Predicated region
    $region2: #{tpu_custom_call.1} parent=1 // pred_check
      _
    $region3: #{tpu_custom_call.1} parent=1 // pred_check_branch
      %11 = sbr.rel (0) target = $region5
    $region4: #{tpu_custom_call.1} parent=1 // pred_region
      %s13 = ssub.s32 256, 256
      %14 = vsyncadd [#allocation3], %s13
      %s15 = sshll.u32 [#allocation2], 4
      %s16 = int_to_ptr.vmem [resolvable:$true] %s15
      %21 = dma.hbm_to_vmem [thread:$0]  %s0, 256, %s16, [#allocation3], 128, 128, 8
    $region5: #{tpu_custom_call.1} parent=1 // pred_fallthru
      _
    // Predicated region
    $region6: #{tpu_custom_call.1} parent=1 // pred_check
      _
    $region7: #{tpu_custom_call.1} parent=1 // pred_check_branch
      %23 = sbr.rel (0) target = $region9
    $region8: #{tpu_custom_call.1} parent=1 // pred_region
      _
    $region9: #{tpu_custom_call.1} parent=1 // pred_fallthru
      _
    // Predicated region
    $region10: #{tpu_custom_call.1} parent=1 // pred_check
      _
    $region11: #{tpu_custom_call.1} parent=1 // pred_check_branch
      %25 = sbr.rel (0) target = $region13
    $region12: #{tpu_custom_call.1} parent=1 // pred_region
      _
    $region13: #{tpu_custom_call.1} parent=1 // pred_fallthru
      _
    // Predicated region
    $region14: #{tpu_custom_call.1} parent=1 // pred_check
      _
    $region15: #{tpu_custom_call.1} parent=1 // pred_check_branch
      %27 = sbr.rel (0) target = $region17
    $region16: #{tpu_custom_call.1} parent=1 // pred_region
      %28 = dma.done [#allocation3], 256
    $region17: #{tpu_custom_call.1} parent=1 // pred_fallthru
      _
    %v29 = vld [vmem:[#allocation2] sm:$0xff]
    %v30 = vld [vmem:[#allocation2 + $0x8] sm:$0xff]
    %v33 = vcombine.high %v29, %v29
    %v34 = vcombine.high %v30, %v30
    %vm37 = vcmask 1043456
    %v38 = vsel %vm37, %v29, 0.0
    %v39 = vrot.slane %v38, 4
    %v40 = vadd.f32 %v38, %v39
    %v41 = vrot.slane %v40, 2
    %v42 = vadd.f32 %v40, %v41
    %v43 = vrot.slane %v42, 1
    %v44 = vadd.f32 %v42, %v43
    %v45 = vsel %vm37, %v33, 0.0
    %v46 = vrot.slane %v45, 4
    %v47 = vadd.f32 %v45, %v46
    %v48 = vrot.slane %v47, 2
    %v49 = vadd.f32 %v47, %v48
    %v50 = vrot.slane %v49, 1
    %v51 = vadd.f32 %v49, %v50
    %v52 = vsel %vm37, %v30, 0.0
    %v53 = vrot.slane %v52, 4
    %v54 = vadd.f32 %v52, %v53
    %v55 = vrot.slane %v54, 2
    %v56 = vadd.f32 %v54, %v55
    %v57 = vrot.slane %v56, 1
    %v58 = vadd.f32 %v56, %v57
    %v59 = vsel %vm37, %v34, 0.0
    %v60 = vrot.slane %v59, 4
    %v61 = vadd.f32 %v59, %v60
    %v62 = vrot.slane %v61, 2
    %v63 = vadd.f32 %v61, %v62
    %v64 = vrot.slane %v63, 1
    %v65 = vadd.f32 %v63, %v64
    %v66 = vmul.f32 %v44, 0.25
    %v67 = vmul.f32 %v51, 0.25
    %v68 = vmul.f32 %v58, 0.25
    %v69 = vmul.f32 %v65, 0.25
    %v70 = vmul.f32 %v29, %v29
    %v71 = vmul.f32 %v30, %v30
    %v74 = vcombine.high %v70, %v70
    %v75 = vcombine.high %v71, %v71
    %v78 = vsel %vm37, %v70, 0.0
    %v79 = vrot.slane %v78, 4
    %v80 = vadd.f32 %v78, %v79
    %v81 = vrot.slane %v80, 2
    %v82 = vadd.f32 %v80, %v81
    %v83 = vrot.slane %v82, 1
    %v84 = vadd.f32 %v82, %v83
    %v85 = vsel %vm37, %v74, 0.0
    %v86 = vrot.slane %v85, 4
    %v87 = vadd.f32 %v85, %v86
    %v88 = vrot.slane %v87, 2
    %v89 = vadd.f32 %v87, %v88
    %v90 = vrot.slane %v89, 1
    %v91 = vadd.f32 %v89, %v90
    %v92 = vsel %vm37, %v71, 0.0
    %v93 = vrot.slane %v92, 4
    %v94 = vadd.f32 %v92, %v93
    %v95 = vrot.slane %v94, 2
    %v96 = vadd.f32 %v94, %v95
    %v97 = vrot.slane %v96, 1
    %v98 = vadd.f32 %v96, %v97
    %v99 = vsel %vm37, %v75, 0.0
    %v100 = vrot.slane %v99, 4
    %v101 = vadd.f32 %v99, %v100
    %v102 = vrot.slane %v101, 2
    %v103 = vadd.f32 %v101, %v102
    %v104 = vrot.slane %v103, 1
    %v105 = vadd.f32 %v103, %v104
    %v106 = vmul.f32 %v84, 0.25
    %v107 = vmul.f32 %v91, 0.25
    %v108 = vmul.f32 %v98, 0.25
    %v109 = vmul.f32 %v105, 0.25
    %v110 = vmul.f32 %v66, %v66
    %v111 = vmul.f32 %v67, %v67
    %v112 = vmul.f32 %v68, %v68
    %v113 = vmul.f32 %v69, %v69
    %v114 = vsub.f32 %v106, %v110
    %v115 = vsub.f32 %v107, %v111
    %v116 = vsub.f32 %v108, %v112
    %v117 = vsub.f32 %v109, %v113
    %v118 = vmax.f32 %v114, 0.0
    %v119 = vmax.f32 %v115, 0.0
    %v120 = vmax.f32 %v116, 0.0
    %v121 = vmax.f32 %v117, 0.0
    %v122 = vadd.f32 %v118, 1e-06
    %v123 = vadd.f32 %v119, 1e-06
    %v124 = vadd.f32 %v120, 1e-06
    %v125 = vadd.f32 %v121, 1e-06
    %v126 = vrsqrt.pop %v122
    %v127 = vrsqrt.pop %v123
    %v128 = vrsqrt.pop %v124
    %v129 = vrsqrt.pop %v125
    %v130 = vld [vmem:[%s1] sm:$0xf]
    %v131 = vld [vmem:[%s2] sm:$0xf]
    %133 = vset.pattern.permute.xlu0 0
    %134 = vperm.xlu0 %133, %v130
    %v135 = vpop.permute.xlu0 %134
    %v137 = vmul.f32 %v135, %v126
    %v138 = vmul.f32 %v135, %v127
    %v139 = vmul.f32 %v135, %v128
    %v140 = vmul.f32 %v135, %v129
    %v145 = vcombine.low %v137, %v138
    %v146 = vcombine.low %v139, %v140
    %v149 = vmul.f32 %v29, %v145
    %v150 = vmul.f32 %v30, %v146
    %v151 = vmul.f32 %v66, %v137
    %v152 = vmul.f32 %v67, %v138
    %v153 = vmul.f32 %v68, %v139
    %v154 = vmul.f32 %v69, %v140
    %156 = vset.pattern.permute.xlu0 0
    %157 = vperm.xlu0 %156, %v131
    %v158 = vpop.permute.xlu0 %157
    %v160 = vsub.f32 %v158, %v151
    %v161 = vsub.f32 %v158, %v152
    %v162 = vsub.f32 %v158, %v153
    %v163 = vsub.f32 %v158, %v154
    %v168 = vcombine.low %v160, %v161
    %v169 = vcombine.low %v162, %v163
    %v172 = vadd.f32 %v149, %v168
    %v173 = vadd.f32 %v150, %v169
    %174 = vst [vmem:[#allocation5] sm:$0xff] %v172
    %175 = vst [vmem:[#allocation5 + $0x8] sm:$0xff] %v173
    // Predicated region
    $region18: #{tpu_custom_call.1} parent=1 // pred_check
      _
    $region19: #{tpu_custom_call.1} parent=1 // pred_check_branch
      %177 = sbr.rel (0) target = $region21
    $region20: #{tpu_custom_call.1} parent=1 // pred_region
      %s179 = ssub.s32 256, 256
      %180 = vsyncadd [#allocation4], %s179
      %s181 = sshll.u32 [#allocation5], 4
      %s182 = int_to_ptr.vmem [resolvable:$true] %s181
      %187 = dma.vmem_to_hbm [thread:$0]  %s182, 256, %s3, [#allocation4], 128, 128, 8
    $region21: #{tpu_custom_call.1} parent=1 // pred_fallthru
      _
    // Predicated region
    $region22: #{tpu_custom_call.1} parent=1 // pred_check
      _
    $region23: #{tpu_custom_call.1} parent=1 // pred_check_branch
      %189 = sbr.rel (0) target = $region25
    $region24: #{tpu_custom_call.1} parent=1 // pred_region
      %190 = dma.done [#allocation4], 256
    $region25: #{tpu_custom_call.1} parent=1 // pred_fallthru
      _
    %191 = vsyncpa [#allocation3], 1
    %192 = vsyncpa [#allocation4], 1

</llo_original>
